<compile_context>
chip_gen: v5e
topology: v5e:2x2
jax: 0.10.0
libtpu: 0.0.40
codegen_flags: <defaults>
</compile_context>

<pallas_src>
import math

import jax
import jax.numpy as jnp
from jax.experimental import pallas as pl
from jax.experimental.pallas import tpu as pltpu


def _nll_partials_kernel(y_row_ref, rhs_ref, y_blk_ref, risk_blk_ref, e_blk_ref,
                         out_ref, nd_acc_ref):
    j = pl.program_id(1)

    @pl.when(j == 0)
    def _():
        nd_acc_ref[...] = jnp.zeros_like(nd_acc_ref)

    # mask[r, c] = 1 iff y_tile[r] <= y_chunk[c] (sample r's risk set).
    # The compare feeds straight into the MXU dot: no standalone f32 mask
    # temporary, no VPU N^2 multiply, no XLU lane reduction.
    mask = (y_blk_ref[...] <= y_row_ref[...]).astype(jnp.float32)     # (TI, TJ)
    nd_acc_ref[...] += jnp.dot(mask, rhs_ref[...],
                               preferred_element_type=jnp.float32)    # (TI, 128)

    @pl.when(j == pl.num_programs(1) - 1)
    def _():
        nd = nd_acc_ref[...]
        num = nd[:, 0:1]     # sum_i mask * exp(risk_i)
        den = nd[:, 1:2]     # sum_i mask
        # den >= 1 always (each sample is in its own risk set; padded rows see
        # every valid sample), so log() is finite.  The +1e-45 mirrors the
        # torch code but is a subnormal that flushes to 0 on TPU.
        log_loss = jnp.log(num / den + 1e-45)                          # (TI, 1)
        e = e_blk_ref[...]
        contrib = (risk_blk_ref[...] - log_loss) * e
        s_contrib = jnp.sum(contrib)
        s_e = jnp.sum(e)
        sub = jax.lax.broadcasted_iota(jnp.int32, (8, 128), 0)
        lane = jax.lax.broadcasted_iota(jnp.int32, (8, 128), 1)
        out_ref[...] = jnp.where((sub == 0) & (lane == 0), s_contrib,
                                 jnp.where((sub == 0) & (lane == 1), s_e, 0.0))


def neg_log_likelihood_with_regular(risk_pred, y, e, weights, weight_decay,
                                    *, tile_i=256, tile_j=512):
    """risk_pred, y, e: (N, 1) (or (N,)) arrays. weights: iterable of weight mats."""
    n = risk_pred.shape[0]
    risk = jnp.reshape(risk_pred, (n, 1)).astype(jnp.float32)
    y = jnp.reshape(y, (n, 1)).astype(jnp.float32)
    e = jnp.reshape(e, (n, 1)).astype(jnp.float32)

    # Pad the sample axis so both grid axes divide evenly (tiles are multiples
    # of 128 -> lane/MXU friendly on all generations).
    step = math.lcm(tile_i, tile_j)
    n_pad = ((n + step - 1) // step) * step
    pad = n_pad - n
    # Padded output rows: y = -1e30 puts every valid sample in their risk set
    # (den >= 1, no NaN) and e = 0 zeroes their contribution.  Padded reduction
    # columns are killed by zeroed RHS rows below.
    y_p = jnp.pad(y, ((0, pad), (0, 0)), constant_values=-1e30)
    risk_p = jnp.pad(risk, ((0, pad), (0, 0)))
    e_p = jnp.pad(e, ((0, pad), (0, 0)))

    valid = (jnp.arange(n_pad, dtype=jnp.int32) < n).astype(jnp.float32)
    rhs = jnp.zeros((n_pad, 128), jnp.float32)
    rhs = rhs.at[:, 0].set(jnp.exp(risk_p[:, 0]) * valid)   # exp(risk), 0 on pad
    rhs = rhs.at[:, 1].set(valid)                           # ones,      0 on pad

    y_row = y_p.reshape(1, n_pad)

    gi = n_pad // tile_i
    gj = n_pad // tile_j

    # Rough per-step VMEM footprint (blocks double-buffered + mask/dot temps),
    # clamped so it also fits v7x's 64 MiB physical VMEM.
    vmem_est = 4 * (2 * tile_j * 129 + tile_i * tile_j + 4 * tile_i * 128
                    + 8 * tile_i + 2 * 8 * 128)
    vmem_limit = int(min(max(2 * vmem_est, 16 << 20), 64 << 20))

    partials = pl.pallas_call(
        _nll_partials_kernel,
        out_shape=jax.ShapeDtypeStruct((gi * 8, 128), jnp.float32),
        grid_spec=pltpu.PrefetchScalarGridSpec(
            num_scalar_prefetch=0,
            grid=(gi, gj),
            in_specs=[
                pl.BlockSpec((1, tile_j), lambda i, j: (0, j)),      # y row chunk
                pl.BlockSpec((tile_j, 128), lambda i, j: (j, 0)),    # [exp(r), 1] rhs
                pl.BlockSpec((tile_i, 1), lambda i, j: (i, 0)),      # y tile (col)
                pl.BlockSpec((tile_i, 1), lambda i, j: (i, 0)),      # risk tile
                pl.BlockSpec((tile_i, 1), lambda i, j: (i, 0)),      # e tile
            ],
            out_specs=pl.BlockSpec((8, 128), lambda i, j: (i, 0)),
            scratch_shapes=[pltpu.VMEM((tile_i, 128), jnp.float32)],
        ),
        compiler_params=pltpu.CompilerParams(
            dimension_semantics=("parallel", "arbitrary"),
            vmem_limit_bytes=vmem_limit,
        ),
    )(y_row, rhs, y_p, risk_p, e_p)

    # Tiny final reduction in plain XLA (per-tile partials -> scalar).
    # NOTE: if sum(e) == 0 this divides by zero, same as the torch reference.
    neg_log_loss = -jnp.sum(partials[:, 0]) / jnp.sum(partials[:, 1])

    # Regularizer: Frobenius norm of each weight tensor, in plain JAX/XLA
    # (independent of the O(N^2) work; keeps lane-misaligned weight loads and
    # weight_decay out of the kernel, so one compiled kernel serves all decays).
    # TODO(synk): torch iterates model.named_parameters(); here the wrapper is
    # handed the explicit list of weight tensors instead.
    reg_loss = sum(jnp.sqrt(jnp.sum(w.astype(jnp.float32) ** 2)) for w in weights)

    return neg_log_loss + weight_decay * reg_loss


def _reference(risk_pred, y, e, weights, weight_decay):
    """Pure-JAX replica of the PyTorch forward, for a sanity check."""
    n = y.shape[0]
    mask = jnp.where(y.reshape(1, n) - y.reshape(n, 1) > 0, 0.0, 1.0)
    log_loss = jnp.exp(risk_pred) * mask
    log_loss = jnp.sum(log_loss, axis=0) / jnp.sum(mask, axis=0) + 1e-45
    log_loss = jnp.log(log_loss).reshape(-1, 1)
    neg_log_loss = -jnp.sum((risk_pred - log_loss) * e) / jnp.sum(e)
    reg = sum(jnp.sqrt(jnp.sum(w * w)) for w in weights)
    return neg_log_loss + weight_decay * reg


if __name__ == "__main__":
    key = jax.random.PRNGKey(0)
    k_risk, k_y, k_e, k_w1, k_w2 = jax.random.split(key, 5)

    N = 300          # batch size (not a tile multiple -> exercises padding)
    IN_FEAT = 16     # synthetic model input features
    HIDDEN = 32      # synthetic model hidden size
    weight_decay = 1e-4

    risk_pred = jax.random.normal(k_risk, (N, 1), dtype=jnp.float32)
    y = jax.random.uniform(k_y, (N, 1), dtype=jnp.float32, minval=0.0, maxval=10.0)
    e = (jax.random.uniform(k_e, (N, 1), dtype=jnp.float32) > 0.4).astype(jnp.float32)
    e = e.at[0, 0].set(1.0)  # ensure sum(e) > 0

    # deterministic synthetic "model" weights (two linear layers)
    w1 = 0.1 * jax.random.normal(k_w1, (HIDDEN, IN_FEAT), dtype=jnp.float32)
    w2 = 0.1 * jax.random.normal(k_w2, (1, HIDDEN), dtype=jnp.float32)
    weights = (w1, w2)

    # small tiles so the demo exercises both grid axes (grid = (3, 3))
    loss = neg_log_likelihood_with_regular(risk_pred, y, e, weights, weight_decay,
                                           tile_i=128, tile_j=128)
    loss = jax.block_until_ready(loss)

    ref = _reference(risk_pred, y, e, weights, weight_decay)
    assert jnp.allclose(loss, ref, rtol=1e-5, atol=1e-5), (loss, ref)

    print("KERNEL_OK")
</pallas_src>

<mosaic_0001>
module attributes {stable_mosaic.version = 11 : i64} {
  func.func @_nll_partials_kernel(%arg0: i32, %arg1: i32, %arg2: memref<1x128xf32, #tpu.memory_space<vmem>>, %arg3: memref<128x128xf32, #tpu.memory_space<vmem>>, %arg4: memref<128x1xf32, #tpu.memory_space<vmem>>, %arg5: memref<128x1xf32, #tpu.memory_space<vmem>>, %arg6: memref<128x1xf32, #tpu.memory_space<vmem>>, %arg7: memref<8x128xf32, #tpu.memory_space<vmem>>, %arg8: memref<128x128xf32, #tpu.memory_space<vmem>>) attributes {dimension_semantics = [#tpu.dimension_semantics<parallel>, #tpu.dimension_semantics<arbitrary>], iteration_bounds = array<i64: 3, 3>, scalar_prefetch = 0 : i64, scratch_operands = 1 : i64, tpu.core_type = #tpu.core_type<tc>, window_params = [{transform_indices = @transform_0, window_bounds = array<i64: 1, 128>}, {transform_indices = @transform_1, window_bounds = array<i64: 128, 128>}, {transform_indices = @transform_2, window_bounds = array<i64: 128, 1>}, {transform_indices = @transform_3, window_bounds = array<i64: 128, 1>}, {transform_indices = @transform_4, window_bounds = array<i64: 128, 1>}, {transform_indices = @transform_5, window_bounds = array<i64: 8, 128>}]} {
    %c0_i32 = arith.constant 0 : i32
    %0 = arith.cmpi eq, %arg1, %c0_i32 : i32
    %1 = arith.extui %0 : i1 to i32
    %c0_i32_0 = arith.constant 0 : i32
    %2 = arith.cmpi ne, %1, %c0_i32_0 : i32
    scf.if %2 {
      %cst_11 = arith.constant 0.000000e+00 : f32
      %18 = vector.broadcast %cst_11 : f32 to vector<128x128xf32>
      %c0_12 = arith.constant 0 : index
      %c0_13 = arith.constant 0 : index
      %19 = vector.load %arg8[%c0_12, %c0_13] : memref<128x128xf32, #tpu.memory_space<vmem>>, vector<128x128xf32>
      tpu.vector_store %arg8[%c0_12, %c0_13], %18 {strides = array<i32>} : memref<128x128xf32, #tpu.memory_space<vmem>>, vector<128x128xf32>,
    } else {
    }
    %c0 = arith.constant 0 : index
    %c0_1 = arith.constant 0 : index
    %3 = vector.load %arg4[%c0, %c0_1] : memref<128x1xf32, #tpu.memory_space<vmem>>, vector<128x1xf32>
    %c0_2 = arith.constant 0 : index
    %c0_3 = arith.constant 0 : index
    %4 = vector.load %arg2[%c0_2, %c0_3] : memref<1x128xf32, #tpu.memory_space<vmem>>, vector<1x128xf32>
    %5 = vector.broadcast %3 : vector<128x1xf32> to vector<128x128xf32>
    %6 = vector.broadcast %4 : vector<1x128xf32> to vector<128x128xf32>
    %7 = arith.cmpf ole, %5, %6 : vector<128x128xf32>
    %8 = arith.extui %7 : vector<128x128xi1> to vector<128x128xi32>
    %9 = arith.sitofp %8 : vector<128x128xi32> to vector<128x128xf32>
    %c0_4 = arith.constant 0 : index
    %c0_5 = arith.constant 0 : index
    %10 = vector.load %arg8[%c0_4, %c0_5] : memref<128x128xf32, #tpu.memory_space<vmem>>, vector<128x128xf32>
    %c0_6 = arith.constant 0 : index
    %c0_7 = arith.constant 0 : index
    %11 = vector.load %arg3[%c0_6, %c0_7] : memref<128x128xf32, #tpu.memory_space<vmem>>, vector<128x128xf32>
    %cst = arith.constant dense<0.000000e+00> : vector<128x128xf32>
    %12 = tpu.matmul %9, %11, %cst {dimension_numbers = #tpu.dot_dimension_numbers<[1], [0], [0], [1], [0, 0, 1, 1], [], []>} : vector<128x128xf32>, vector<128x128xf32>, vector<128x128xf32> -> vector<128x128xf32>
    %13 = arith.addf %10, %12 : vector<128x128xf32>
    %c0_8 = arith.constant 0 : index
    %c0_9 = arith.constant 0 : index
    %14 = vector.load %arg8[%c0_8, %c0_9] : memref<128x128xf32, #tpu.memory_space<vmem>>, vector<128x128xf32>
    tpu.vector_store %arg8[%c0_8, %c0_9], %13 {strides = array<i32>} : memref<128x128xf32, #tpu.memory_space<vmem>>, vector<128x128xf32>,
    %c2_i32 = arith.constant 2 : i32
    %15 = arith.cmpi eq, %arg1, %c2_i32 : i32
    %16 = arith.extui %15 : i1 to i32
    %c0_i32_10 = arith.constant 0 : i32
    %17 = arith.cmpi ne, %16, %c0_i32_10 : i32
    scf.if %17 {
      %c0_11 = arith.constant 0 : index
      %c0_12 = arith.constant 0 : index
      %18 = vector.load %arg8[%c0_11, %c0_12] : memref<128x128xf32, #tpu.memory_space<vmem>>, vector<128x128xf32>
      %19 = vector.extract_strided_slice %18 {offsets = [0, 0], sizes = [128, 1], strides = [1, 1]} : vector<128x128xf32> to vector<128x1xf32>
      %20 = vector.extract_strided_slice %18 {offsets = [0, 1], sizes = [128, 1], strides = [1, 1]} : vector<128x128xf32> to vector<128x1xf32>
      %21 = arith.divf %19, %20 : vector<128x1xf32>
      %cst_13 = arith.constant 1.401300e-45 : f32
      %22 = vector.broadcast %cst_13 : f32 to vector<128x1xf32>
      %23 = arith.addf %21, %22 : vector<128x1xf32>
      %24 = math.log %23 : vector<128x1xf32>
      %c0_14 = arith.constant 0 : index
      %c0_15 = arith.constant 0 : index
      %25 = vector.load %arg6[%c0_14, %c0_15] : memref<128x1xf32, #tpu.memory_space<vmem>>, vector<128x1xf32>
      %c0_16 = arith.constant 0 : index
      %c0_17 = arith.constant 0 : index
      %26 = vector.load %arg5[%c0_16, %c0_17] : memref<128x1xf32, #tpu.memory_space<vmem>>, vector<128x1xf32>
      %27 = arith.subf %26, %24 : vector<128x1xf32>
      %28 = arith.mulf %27, %25 : vector<128x1xf32>
      %29 = vector.shape_cast %28 : vector<128x1xf32> to vector<1x128x1xf32>
      %cst_18 = arith.constant dense<0.000000e+00> : vector<1xf32>
      %30 = vector.multi_reduction <add>, %29, %cst_18 [1, 2] : vector<1x128x1xf32> to vector<1xf32>
      %31 = vector.shape_cast %30 : vector<1xf32> to vector<1x1x1xf32>
      %32 = vector.extract %31[0, 0, 0] : f32 from vector<1x1x1xf32>
      %33 = vector.shape_cast %25 : vector<128x1xf32> to vector<1x128x1xf32>
      %cst_19 = arith.constant dense<0.000000e+00> : vector<1xf32>
      %34 = vector.multi_reduction <add>, %33, %cst_19 [1, 2] : vector<1x128x1xf32> to vector<1xf32>
      %35 = vector.shape_cast %34 : vector<1xf32> to vector<1x1x1xf32>
      %36 = vector.extract %35[0, 0, 0] : f32 from vector<1x1x1xf32>
      %37 = tpu.iota {dimensions = array<i32: 0>} : vector<8x128xi32>
      %38 = tpu.iota {dimensions = array<i32: 1>} : vector<8x128xi32>
      %c0_i32_20 = arith.constant 0 : i32
      %39 = vector.broadcast %c0_i32_20 : i32 to vector<8x128xi32>
      %40 = arith.cmpi eq, %37, %39 : vector<8x128xi32>
      %c0_i32_21 = arith.constant 0 : i32
      %41 = vector.broadcast %c0_i32_21 : i32 to vector<8x128xi32>
      %42 = arith.cmpi eq, %38, %41 : vector<8x128xi32>
      %43 = arith.andi %40, %42 : vector<8x128xi1>
      %c0_i32_22 = arith.constant 0 : i32
      %44 = vector.broadcast %c0_i32_22 : i32 to vector<8x128xi32>
      %45 = arith.cmpi eq, %37, %44 : vector<8x128xi32>
      %c1_i32 = arith.constant 1 : i32
      %46 = vector.broadcast %c1_i32 : i32 to vector<8x128xi32>
      %47 = arith.cmpi eq, %38, %46 : vector<8x128xi32>
      %48 = arith.andi %45, %47 : vector<8x128xi1>
      %cst_23 = arith.constant 0.000000e+00 : f32
      %49 = vector.broadcast %36 : f32 to vector<8x128xf32>
      %50 = vector.broadcast %cst_23 : f32 to vector<8x128xf32>
      %51 = arith.select %48, %49, %50 : vector<8x128xi1>, vector<8x128xf32>
      %52 = vector.broadcast %32 : f32 to vector<8x128xf32>
      %53 = arith.select %43, %52, %51 : vector<8x128xi1>, vector<8x128xf32>
      %c0_24 = arith.constant 0 : index
      %c0_25 = arith.constant 0 : index
      %54 = vector.load %arg7[%c0_24, %c0_25] : memref<8x128xf32, #tpu.memory_space<vmem>>, vector<8x128xf32>
      tpu.vector_store %arg7[%c0_24, %c0_25], %53 {strides = array<i32>} : memref<8x128xf32, #tpu.memory_space<vmem>>, vector<8x128xf32>,
    } else {
    }
    return
  }
  func.func @transform_0(%arg0: i32, %arg1: i32) -> (i32, i32) {
    %c0_i32 = arith.constant 0 : i32
    %c0_i32_0 = arith.constant 0 : i32
    return %c0_i32, %arg1 : i32, i32
  }
  func.func @transform_1(%arg0: i32, %arg1: i32) -> (i32, i32) {
    %c0_i32 = arith.constant 0 : i32
    %c0_i32_0 = arith.constant 0 : i32
    return %arg1, %c0_i32 : i32, i32
  }
  func.func @transform_2(%arg0: i32, %arg1: i32) -> (i32, i32) {
    %c0_i32 = arith.constant 0 : i32
    %c0_i32_0 = arith.constant 0 : i32
    return %arg0, %c0_i32 : i32, i32
  }
  func.func @transform_3(%arg0: i32, %arg1: i32) -> (i32, i32) {
    %c0_i32 = arith.constant 0 : i32
    %c0_i32_0 = arith.constant 0 : i32
    return %arg0, %c0_i32 : i32, i32
  }
  func.func @transform_4(%arg0: i32, %arg1: i32) -> (i32, i32) {
    %c0_i32 = arith.constant 0 : i32
    %c0_i32_0 = arith.constant 0 : i32
    return %arg0, %c0_i32 : i32, i32
  }
  func.func @transform_5(%arg0: i32, %arg1: i32) -> (i32, i32) {
    %c0_i32 = arith.constant 0 : i32
    %c0_i32_0 = arith.constant 0 : i32
    return %arg0, %c0_i32 : i32, i32
  }
}

</mosaic_0001>

<llo_original>
// kernel: tpu_custom_call.1
$region0: #{tpu_custom_call.1}
  #allocation0 [shape = 'u32[]', space=smem, size = 0x4, offset = 0x4, fixed_abs, tag = 'smem constant byte address 0x4 - core index']
  #allocation1 [shape = 'u32[72,128]{1,0:T(1,128)}', space=vmem, size = 0x9000, scoped, tag = 'internal scratch']
  #allocation2 [shape = 'f32[128,128]{1,0:T(8,128)}', space=vmem, size = 0x10000, scoped, tag = 'scratch operand']
  %s0 = inlined_call_operand.vmem [shape: f32[1,384], index: 0, kind: input, shape index: {}]
  %s1 = inlined_call_operand.vmem [shape: f32[384,128], index: 1, kind: input, shape index: {}]
  %s2 = inlined_call_operand.vmem [shape: f32[384,1], index: 2, kind: input, shape index: {}]
  %s3 = inlined_call_operand.vmem [shape: f32[384,1], index: 3, kind: input, shape index: {}]
  %s4 = inlined_call_operand.vmem [shape: f32[384,1], index: 4, kind: input, shape index: {}]
  %s5 = inlined_call_operand.hbm [shape: f32[24,128], index: 5, kind: output, shape index: {}]
  %s6 = sld [smem:[#allocation0]]
  $region61: #{tpu_custom_call.1} parent=0
    _
  %s8 = ssub.s32 1, %s6
  %s9 = scalar_select 0, %s8, %s6
  $region1: #{tpu_custom_call.1} parent=0
    #allocation3 [shape = 'u8[8192]{0}', space=vmem, size = 0x2000, scoped, tag = 'output window, operand 0']
    #allocation4 [shape = 's32[2]{0}', space=sflag, size = 0x8, scoped, tag = 'scoped memory for tpu_custom_call.1']
    %10 = vsyncpa [#allocation4], 0
    %s11 = scalar_lea.sflag [#allocation4], 1
    %12 = vsyncpa %s11, 0
    loop: start=0, step=1, limit=11
    $region2: #{tpu_custom_call.1} parent=1 // loop_pre_header
      _
    $region3: #{tpu_custom_call.1} parent=1 // loop_header
      %s14 = sphi 0, %s18
      %p15 = scmp.ge.s32.totalorder %s14, 11
      %s21 = sphi 0, %s33
      %s22 = sphi 0, %s29
      %s23 = sphi 0, %s21
      %s24 = sphi 0, %s22
      %s25 = sphi 0, %s23
      %s26 = sphi 0, %s24
      %s36 = sphi 0, %s38
      %s39 = sphi 0, %s36
      %s40 = sphi 0, %s39
      %s56 = sphi 0, %s40
      %s62 = sphi 0, %s64
      %s65 = sphi 0, %s62
      %s66 = sphi 0, %s65
      %s82 = sphi 0, %s66
      %s88 = sphi 0, %s90
      %s91 = sphi 0, %s88
      %s92 = sphi 0, %s91
      %s108 = sphi 0, %s92
      %s114 = sphi 0, %s116
      %s117 = sphi 0, %s114
      %s118 = sphi 0, %s117
      %s134 = sphi 0, %s118
      %s140 = sphi 0, %s142
      %s143 = sphi 0, %s140
      %s144 = sphi 0, %s143
      %s160 = sphi 0, %s144
      %s166 = sphi 0, %s168
      %s169 = sphi 0, %s166
      %s170 = sphi 0, %s169
      %s186 = sphi 0, %s170
    $region4: #{tpu_custom_call.1} parent=1 // loop_header_branch
      %17 = sbr.rel (%p15) target = $region8
    $region5: #{tpu_custom_call.1} parent=1 // loop_body
      %s19 = ssub.s32 %s14, 1
      %s20 = ssub.s32 %s14, 2
      %s27 = sadd.s32 1, %s22
      %p28 = scmp.ge.s32.totalorder %s27, 3
      %s29 = scalar_select %p28, 0, %s27
      %s30 = sadd.s32 1, %s21
      %s31 = scalar_select %p28, %s30, %s21
      %p32 = scmp.ge.s32.totalorder %s31, 3
      %s33 = scalar_select %p32, 0, %s31
      %s34 = ssub.s32 %s22, %s29
      %p35 = scmp.eq.s32.totalorder %s34, 0
      %s37 = sadd.s32 %s36, 1
      %s38 = scalar_select %p35, %s36, %s37
      %p41 = pneg %p35
      %p42 = scmp.eq.s32.totalorder %s14, 8
      %p43 = por %p41, %p42
      %p44 = scmp.ne.s32.totalorder %s36, %s39
      %p45 = scmp.eq.s32.totalorder %s14, 0
      %p46 = por %p44, %p45
      %p47 = scmp.ne.s32.totalorder %s36, %s39
      %p48 = scmp.eq.s32.totalorder %s19, 8
      %p49 = por %p47, %p48
      %p50 = scmp.ne.s32.totalorder %s39, %s40
      %p51 = scmp.eq.s32.totalorder %s19, 0
      %p52 = por %p50, %p51
      %p53 = scmp.ne.s32.totalorder %s39, %s40
      %p54 = scmp.eq.s32.totalorder %s20, 8
      %p55 = por %p53, %p54
      %p57 = scmp.ne.s32.totalorder %s40, %s56
      %p58 = scmp.eq.s32.totalorder %s20, 0
      %p59 = por %p57, %p58
      %s60 = ssub.s32 %s22, %s29
      %p61 = scmp.eq.s32.totalorder %s60, 0
      %s63 = sadd.s32 %s62, 1
      %s64 = scalar_select %p61, %s62, %s63
      %p67 = pneg %p61
      %p68 = scmp.eq.s32.totalorder %s14, 8
      %p69 = por %p67, %p68
      %p70 = scmp.ne.s32.totalorder %s62, %s65
      %p71 = scmp.eq.s32.totalorder %s14, 0
      %p72 = por %p70, %p71
      %p73 = scmp.ne.s32.totalorder %s62, %s65
      %p74 = scmp.eq.s32.totalorder %s19, 8
      %p75 = por %p73, %p74
      %p76 = scmp.ne.s32.totalorder %s65, %s66
      %p77 = scmp.eq.s32.totalorder %s19, 0
      %p78 = por %p76, %p77
      %p79 = scmp.ne.s32.totalorder %s65, %s66
      %p80 = scmp.eq.s32.totalorder %s20, 8
      %p81 = por %p79, %p80
      %p83 = scmp.ne.s32.totalorder %s66, %s82
      %p84 = scmp.eq.s32.totalorder %s20, 0
      %p85 = por %p83, %p84
      %s86 = ssub.s32 %s21, %s33
      %p87 = scmp.eq.s32.totalorder %s86, 0
      %s89 = sadd.s32 %s88, 1
      %s90 = scalar_select %p87, %s88, %s89
      %p93 = pneg %p87
      %p94 = scmp.eq.s32.totalorder %s14, 8
      %p95 = por %p93, %p94
      %p96 = scmp.ne.s32.totalorder %s88, %s91
      %p97 = scmp.eq.s32.totalorder %s14, 0
      %p98 = por %p96, %p97
      %p99 = scmp.ne.s32.totalorder %s88, %s91
      %p100 = scmp.eq.s32.totalorder %s19, 8
      %p101 = por %p99, %p100
      %p102 = scmp.ne.s32.totalorder %s91, %s92
      %p103 = scmp.eq.s32.totalorder %s19, 0
      %p104 = por %p102, %p103
      %p105 = scmp.ne.s32.totalorder %s91, %s92
      %p106 = scmp.eq.s32.totalorder %s20, 8
      %p107 = por %p105, %p106
      %p109 = scmp.ne.s32.totalorder %s92, %s108
      %p110 = scmp.eq.s32.totalorder %s20, 0
      %p111 = por %p109, %p110
      %s112 = ssub.s32 %s21, %s33
      %p113 = scmp.eq.s32.totalorder %s112, 0
      %s115 = sadd.s32 %s114, 1
      %s116 = scalar_select %p113, %s114, %s115
      %p119 = pneg %p113
      %p120 = scmp.eq.s32.totalorder %s14, 8
      %p121 = por %p119, %p120
      %p122 = scmp.ne.s32.totalorder %s114, %s117
      %p123 = scmp.eq.s32.totalorder %s14, 0
      %p124 = por %p122, %p123
      %p125 = scmp.ne.s32.totalorder %s114, %s117
      %p126 = scmp.eq.s32.totalorder %s19, 8
      %p127 = por %p125, %p126
      %p128 = scmp.ne.s32.totalorder %s117, %s118
      %p129 = scmp.eq.s32.totalorder %s19, 0
      %p130 = por %p128, %p129
      %p131 = scmp.ne.s32.totalorder %s117, %s118
      %p132 = scmp.eq.s32.totalorder %s20, 8
      %p133 = por %p131, %p132
      %p135 = scmp.ne.s32.totalorder %s118, %s134
      %p136 = scmp.eq.s32.totalorder %s20, 0
      %p137 = por %p135, %p136
      %s138 = ssub.s32 %s21, %s33
      %p139 = scmp.eq.s32.totalorder %s138, 0
      %s141 = sadd.s32 %s140, 1
      %s142 = scalar_select %p139, %s140, %s141
      %p145 = pneg %p139
      %p146 = scmp.eq.s32.totalorder %s14, 8
      %p147 = por %p145, %p146
      %p148 = scmp.ne.s32.totalorder %s140, %s143
      %p149 = scmp.eq.s32.totalorder %s14, 0
      %p150 = por %p148, %p149
      %p151 = scmp.ne.s32.totalorder %s140, %s143
      %p152 = scmp.eq.s32.totalorder %s19, 8
      %p153 = por %p151, %p152
      %p154 = scmp.ne.s32.totalorder %s143, %s144
      %p155 = scmp.eq.s32.totalorder %s19, 0
      %p156 = por %p154, %p155
      %p157 = scmp.ne.s32.totalorder %s143, %s144
      %p158 = scmp.eq.s32.totalorder %s20, 8
      %p159 = por %p157, %p158
      %p161 = scmp.ne.s32.totalorder %s144, %s160
      %p162 = scmp.eq.s32.totalorder %s20, 0
      %p163 = por %p161, %p162
      %s164 = ssub.s32 %s21, %s33
      %p165 = scmp.eq.s32.totalorder %s164, 0
      %s167 = sadd.s32 %s166, 1
      %s168 = scalar_select %p165, %s166, %s167
      %p171 = pneg %p165
      %p172 = scmp.eq.s32.totalorder %s14, 8
      %p173 = por %p171, %p172
      %p174 = scmp.ne.s32.totalorder %s166, %s169
      %p175 = scmp.eq.s32.totalorder %s14, 0
      %p176 = por %p174, %p175
      %p177 = scmp.ne.s32.totalorder %s166, %s169
      %p178 = scmp.eq.s32.totalorder %s19, 8
      %p179 = por %p177, %p178
      %p180 = scmp.ne.s32.totalorder %s169, %s170
      %p181 = scmp.eq.s32.totalorder %s19, 0
      %p182 = por %p180, %p181
      %p183 = scmp.ne.s32.totalorder %s169, %s170
      %p184 = scmp.eq.s32.totalorder %s20, 8
      %p185 = por %p183, %p184
      %p187 = scmp.ne.s32.totalorder %s170, %s186
      %p188 = scmp.eq.s32.totalorder %s20, 0
      %p189 = por %p187, %p188
      %p190 = scmp.le.s32.totalorder 1, %s14
      %p191 = scmp.lt.s32.totalorder %s14, 10
      %p192 = pnand %p190, %p191
      %p193 = pneg %p192
      // Predicated region
      $region9: #{tpu_custom_call.1} parent=5 // pred_check
        _
      $region10: #{tpu_custom_call.1} parent=5 // pred_check_branch
        %195 = sbr.rel (%p192) target = $region12
      $region11: #{tpu_custom_call.1} parent=5 // pred_region
        %s196 = ssub.s32 %s14, 1
      $region12: #{tpu_custom_call.1} parent=5 // pred_fallthru
        _
      %p197 = scmp.lt.s32.totalorder %s14, 9
      // Predicated region
      $region13: #{tpu_custom_call.1} parent=5 // pred_check
        %p198 = pneg %p197
      $region14: #{tpu_custom_call.1} parent=5 // pred_check_branch
        %200 = sbr.rel (%p198) target = $region16
      $region15: #{tpu_custom_call.1} parent=5 // pred_region
        // Predicated region
        $region17: #{tpu_custom_call.1} parent=15 // pred_check
          %p201 = pneg %p46
        $region18: #{tpu_custom_call.1} parent=15 // pred_check_branch
          %203 = sbr.rel (%p201) target = $region20
        $region19: #{tpu_custom_call.1} parent=15 // pred_region
          %p204 = scmp.lt.s32.totalorder %s22, 2
          %s205 = scalar_select %p204, %s22, 2
          %s206 = scalar_lea.vmem %s0, %s205
        $region20: #{tpu_custom_call.1} parent=15 // pred_fallthru
          _
        // Predicated region
        $region21: #{tpu_custom_call.1} parent=15 // pred_check
          %p207 = pneg %p72
        $region22: #{tpu_custom_call.1} parent=15 // pred_check_branch
          %209 = sbr.rel (%p207) target = $region24
        $region23: #{tpu_custom_call.1} parent=15 // pred_region
          %s210 = smul.u32 16, %s22
          %p211 = scmp.lt.s32.totalorder %s210, 47
          %s212 = scalar_select %p211, %s210, 47
          %s213 = smul.addr %s212, 8
          %s214 = scalar_lea.vmem %s1, %s213
          %s215 = smul.u32 16, %s22
        $region24: #{tpu_custom_call.1} parent=15 // pred_fallthru
          _
        // Predicated region
        $region25: #{tpu_custom_call.1} parent=15 // pred_check
          %p216 = pneg %p98
        $region26: #{tpu_custom_call.1} parent=15 // pred_check_branch
          %218 = sbr.rel (%p216) target = $region28
        $region27: #{tpu_custom_call.1} parent=15 // pred_region
          %s219 = smul.u32 16, %s21
          %p220 = scmp.lt.s32.totalorder %s219, 47
          %s221 = scalar_select %p220, %s219, 47
          %s222 = smul.addr %s221, 8
          %s223 = scalar_lea.vmem %s2, %s222
          %s224 = smul.u32 16, %s21
        $region28: #{tpu_custom_call.1} parent=15 // pred_fallthru
          _
        // Predicated region
        $region29: #{tpu_custom_call.1} parent=15 // pred_check
          %p225 = pneg %p124
        $region30: #{tpu_custom_call.1} parent=15 // pred_check_branch
          %227 = sbr.rel (%p225) target = $region32
        $region31: #{tpu_custom_call.1} parent=15 // pred_region
          %s228 = smul.u32 16, %s21
          %p229 = scmp.lt.s32.totalorder %s228, 47
          %s230 = scalar_select %p229, %s228, 47
          %s231 = smul.addr %s230, 8
          %s232 = scalar_lea.vmem %s3, %s231
          %s233 = smul.u32 16, %s21
        $region32: #{tpu_custom_call.1} parent=15 // pred_fallthru
          _
        // Predicated region
        $region33: #{tpu_custom_call.1} parent=15 // pred_check
          %p234 = pneg %p150
        $region34: #{tpu_custom_call.1} parent=15 // pred_check_branch
          %236 = sbr.rel (%p234) target = $region36
        $region35: #{tpu_custom_call.1} parent=15 // pred_region
          %s237 = smul.u32 16, %s21
          %p238 = scmp.lt.s32.totalorder %s237, 47
          %s239 = scalar_select %p238, %s237, 47
          %s240 = smul.addr %s239, 8
          %s241 = scalar_lea.vmem %s4, %s240
          %s242 = smul.u32 16, %s21
        $region36: #{tpu_custom_call.1} parent=15 // pred_fallthru
          _
      $region16: #{tpu_custom_call.1} parent=5 // pred_fallthru
        _
      %p243 = scmp.le.s32.totalorder 1, %s14
      %p244 = scmp.lt.s32.totalorder %s14, 10
      %p245 = pnand %p243, %p244
      %p246 = pneg %p245
      // Predicated region
      $region37: #{tpu_custom_call.1} parent=5 // pred_check
        _
      $region38: #{tpu_custom_call.1} parent=5 // pred_check_branch
        %248 = sbr.rel (%p245) target = $region40
      $region39: #{tpu_custom_call.1} parent=5 // pred_region
        %s249 = ssub.s32 %s14, 1
        %p250 = scmp.lt.s32.totalorder %s24, 2
        %s251 = scalar_select %p250, %s24, 2
        %s252 = scalar_lea.vmem %s0, %s251
        %p253 = pneg %p52
        %p254 = pneg %p49
        %s255 = smul.u32 16, %s24
        %p256 = scmp.lt.s32.totalorder %s255, 47
        %s257 = scalar_select %p256, %s255, 47
        %s258 = smul.addr %s257, 8
        %s259 = scalar_lea.vmem %s1, %s258
        %p260 = pneg %p78
        %p261 = pneg %p75
        %s262 = smul.u32 16, %s23
        %p263 = scmp.lt.s32.totalorder %s262, 47
        %s264 = scalar_select %p263, %s262, 47
        %s265 = smul.addr %s264, 8
        %s266 = scalar_lea.vmem %s2, %s265
        %p267 = pneg %p104
        %p268 = pneg %p101
        %s269 = smul.u32 16, %s23
        %p270 = scmp.lt.s32.totalorder %s269, 47
        %s271 = scalar_select %p270, %s269, 47
        %s272 = smul.addr %s271, 8
        %s273 = scalar_lea.vmem %s3, %s272
        %p274 = pneg %p130
        %p275 = pneg %p127
        %s276 = smul.u32 16, %s23
        %p277 = scmp.lt.s32.totalorder %s276, 47
        %s278 = scalar_select %p277, %s276, 47
        %s279 = smul.addr %s278, 8
        %s280 = scalar_lea.vmem %s4, %s279
        %p281 = pneg %p156
        %p282 = pneg %p153
        %p283 = pneg %p182
        %p284 = pneg %p179
        %s285 = sand.u32 %s169, 1
        %s286 = scalar_lea.sflag [#allocation4], %s285
        %s287 = sand.u32 %s169, 1
        %s288 = smul.addr %s287, 8
        %s289 = scalar_lea.vmem [#allocation3], %s288
        %p290 = scmp.lt.s32.totalorder %s24, 2
        %s291 = scalar_select %p290, %s24, 2
        %s292 = scalar_lea.vmem %s0, %s291
        %s293 = smul.u32 16, %s24
        %p294 = scmp.lt.s32.totalorder %s293, 47
        %s295 = scalar_select %p294, %s293, 47
        %s296 = smul.addr %s295, 8
        %s297 = scalar_lea.vmem %s1, %s296
        %s298 = smul.u32 16, %s24
        %s299 = smul.u32 16, %s23
        %p300 = scmp.lt.s32.totalorder %s299, 47
        %s301 = scalar_select %p300, %s299, 47
        %s302 = smul.addr %s301, 8
        %s303 = scalar_lea.vmem %s2, %s302
        %s304 = smul.u32 16, %s23
        %s305 = smul.u32 16, %s23
        %p306 = scmp.lt.s32.totalorder %s305, 47
        %s307 = scalar_select %p306, %s305, 47
        %s308 = smul.addr %s307, 8
        %s309 = scalar_lea.vmem %s3, %s308
        %s310 = smul.u32 16, %s23
        %s311 = smul.u32 16, %s23
        %p312 = scmp.lt.s32.totalorder %s311, 47
        %s313 = scalar_select %p312, %s311, 47
        %s314 = smul.addr %s313, 8
        %s315 = scalar_lea.vmem %s4, %s314
        %s316 = smul.u32 16, %s23
        %p317 = scmp.eq.s32.totalorder %s24, 0
        // Predicated region
        $region41: #{tpu_custom_call.1} parent=39 // pred_check
          %p318 = pneg %p317
        $region42: #{tpu_custom_call.1} parent=39 // pred_check_branch
          %320 = sbr.rel (%p318) target = $region44
        $region43: #{tpu_custom_call.1} parent=39 // pred_region
          %321 = vst [vmem:[#allocation2] sm:$0xff] 0.0
          %322 = vst [vmem:[#allocation2 + $0x8] sm:$0xff] 0.0
          %323 = vst [vmem:[#allocation2 + $0x10] sm:$0xff] 0.0
          %324 = vst [vmem:[#allocation2 + $0x18] sm:$0xff] 0.0
          %325 = vst [vmem:[#allocation2 + $0x20] sm:$0xff] 0.0
          %326 = vst [vmem:[#allocation2 + $0x28] sm:$0xff] 0.0
          %327 = vst [vmem:[#allocation2 + $0x30] sm:$0xff] 0.0
          %328 = vst [vmem:[#allocation2 + $0x38] sm:$0xff] 0.0
          %329 = vst [vmem:[#allocation2 + $0x40] sm:$0xff] 0.0
          %330 = vst [vmem:[#allocation2 + $0x48] sm:$0xff] 0.0
          %331 = vst [vmem:[#allocation2 + $0x50] sm:$0xff] 0.0
          %332 = vst [vmem:[#allocation2 + $0x58] sm:$0xff] 0.0
          %333 = vst [vmem:[#allocation2 + $0x60] sm:$0xff] 0.0
          %334 = vst [vmem:[#allocation2 + $0x68] sm:$0xff] 0.0
          %335 = vst [vmem:[#allocation2 + $0x70] sm:$0xff] 0.0
          %336 = vst [vmem:[#allocation2 + $0x78] sm:$0xff] 0.0
        $region44: #{tpu_custom_call.1} parent=39 // pred_fallthru
          _
        %v337 = vld [vmem:[%s303] sm:$0xff]
        %v338 = vld [vmem:[%s303 + $0x8] sm:$0xff]
        %v339 = vld [vmem:[%s303 + $0x10] sm:$0xff]
        %v340 = vld [vmem:[%s303 + $0x18] sm:$0xff]
        %v341 = vld [vmem:[%s303 + $0x20] sm:$0xff]
        %v342 = vld [vmem:[%s303 + $0x28] sm:$0xff]
        %v343 = vld [vmem:[%s303 + $0x30] sm:$0xff]
        %v344 = vld [vmem:[%s303 + $0x38] sm:$0xff]
        %v345 = vld [vmem:[%s303 + $0x40] sm:$0xff]
        %v346 = vld [vmem:[%s303 + $0x48] sm:$0xff]
        %v347 = vld [vmem:[%s303 + $0x50] sm:$0xff]
        %v348 = vld [vmem:[%s303 + $0x58] sm:$0xff]
        %v349 = vld [vmem:[%s303 + $0x60] sm:$0xff]
        %v350 = vld [vmem:[%s303 + $0x68] sm:$0xff]
        %v351 = vld [vmem:[%s303 + $0x70] sm:$0xff]
        %v352 = vld [vmem:[%s303 + $0x78] sm:$0xff]
        %v353 = vld [vmem:[%s292] sm:$0x1]
        %355 = vset.pattern.permute.xlu0 0
        %356 = vperm.xlu0 %355, %v337
        %v357 = vpop.permute.xlu0 %356
        %360 = vset.pattern.permute.xlu0 0
        %361 = vperm.xlu0 %360, %v338
        %v362 = vpop.permute.xlu0 %361
        %365 = vset.pattern.permute.xlu0 0
        %366 = vperm.xlu0 %365, %v339
        %v367 = vpop.permute.xlu0 %366
        %370 = vset.pattern.permute.xlu0 0
        %371 = vperm.xlu0 %370, %v340
        %v372 = vpop.permute.xlu0 %371
        %375 = vset.pattern.permute.xlu0 0
        %376 = vperm.xlu0 %375, %v341
        %v377 = vpop.permute.xlu0 %376
        %380 = vset.pattern.permute.xlu0 0
        %381 = vperm.xlu0 %380, %v342
        %v382 = vpop.permute.xlu0 %381
        %385 = vset.pattern.permute.xlu0 0
        %386 = vperm.xlu0 %385, %v343
        %v387 = vpop.permute.xlu0 %386
        %390 = vset.pattern.permute.xlu0 0
        %391 = vperm.xlu0 %390, %v344
        %v392 = vpop.permute.xlu0 %391
        %395 = vset.pattern.permute.xlu0 0
        %396 = vperm.xlu0 %395, %v345
        %v397 = vpop.permute.xlu0 %396
        %400 = vset.pattern.permute.xlu0 0
        %401 = vperm.xlu0 %400, %v346
        %v402 = vpop.permute.xlu0 %401
        %405 = vset.pattern.permute.xlu0 0
        %406 = vperm.xlu0 %405, %v347
        %v407 = vpop.permute.xlu0 %406
        %410 = vset.pattern.permute.xlu0 0
        %411 = vperm.xlu0 %410, %v348
        %v412 = vpop.permute.xlu0 %411
        %415 = vset.pattern.permute.xlu0 0
        %416 = vperm.xlu0 %415, %v349
        %v417 = vpop.permute.xlu0 %416
        %420 = vset.pattern.permute.xlu0 0
        %421 = vperm.xlu0 %420, %v350
        %v422 = vpop.permute.xlu0 %421
        %425 = vset.pattern.permute.xlu0 0
        %426 = vperm.xlu0 %425, %v351
        %v427 = vpop.permute.xlu0 %426
        %430 = vset.pattern.permute.xlu0 0
        %431 = vperm.xlu0 %430, %v352
        %v432 = vpop.permute.xlu0 %431
        %v435 = vperm.slane %v353, 0
        %vm437 = vcmp.le.f32.partialorder %v357, %v435
        %vm438 = vcmp.le.f32.partialorder %v362, %v435
        %vm439 = vcmp.le.f32.partialorder %v367, %v435
        %vm440 = vcmp.le.f32.partialorder %v372, %v435
        %vm441 = vcmp.le.f32.partialorder %v377, %v435
        %vm442 = vcmp.le.f32.partialorder %v382, %v435
        %vm443 = vcmp.le.f32.partialorder %v387, %v435
        %vm444 = vcmp.le.f32.partialorder %v392, %v435
        %vm445 = vcmp.le.f32.partialorder %v397, %v435
        %vm446 = vcmp.le.f32.partialorder %v402, %v435
        %vm447 = vcmp.le.f32.partialorder %v407, %v435
        %vm448 = vcmp.le.f32.partialorder %v412, %v435
        %vm449 = vcmp.le.f32.partialorder %v417, %v435
        %vm450 = vcmp.le.f32.partialorder %v422, %v435
        %vm451 = vcmp.le.f32.partialorder %v427, %v435
        %vm452 = vcmp.le.f32.partialorder %v432, %v435
        %v453 = vsel %vm437, 1, 0
        %v454 = vsel %vm438, 1, 0
        %v455 = vsel %vm439, 1, 0
        %v456 = vsel %vm440, 1, 0
        %v457 = vsel %vm441, 1, 0
        %v458 = vsel %vm442, 1, 0
        %v459 = vsel %vm443, 1, 0
        %v460 = vsel %vm444, 1, 0
        %v461 = vsel %vm445, 1, 0
        %v462 = vsel %vm446, 1, 0
        %v463 = vsel %vm447, 1, 0
        %v464 = vsel %vm448, 1, 0
        %v465 = vsel %vm449, 1, 0
        %v466 = vsel %vm450, 1, 0
        %v467 = vsel %vm451, 1, 0
        %v468 = vsel %vm452, 1, 0
        %v469 = vcvt.s32.f32 %v453
        %v470 = vcvt.s32.f32 %v454
        %v471 = vcvt.s32.f32 %v455
        %v472 = vcvt.s32.f32 %v456
        %v473 = vcvt.s32.f32 %v457
        %v474 = vcvt.s32.f32 %v458
        %v475 = vcvt.s32.f32 %v459
        %v476 = vcvt.s32.f32 %v460
        %v477 = vcvt.s32.f32 %v461
        %v478 = vcvt.s32.f32 %v462
        %v479 = vcvt.s32.f32 %v463
        %v480 = vcvt.s32.f32 %v464
        %v481 = vcvt.s32.f32 %v465
        %v482 = vcvt.s32.f32 %v466
        %v483 = vcvt.s32.f32 %v467
        %v484 = vcvt.s32.f32 %v468
        %v485 = vld [vmem:[#allocation2] sm:$0xff]
        %v486 = vld [vmem:[#allocation2 + $0x8] sm:$0xff]
        %v487 = vld [vmem:[#allocation2 + $0x10] sm:$0xff]
        %v488 = vld [vmem:[#allocation2 + $0x18] sm:$0xff]
        %v489 = vld [vmem:[#allocation2 + $0x20] sm:$0xff]
        %v490 = vld [vmem:[#allocation2 + $0x28] sm:$0xff]
        %v491 = vld [vmem:[#allocation2 + $0x30] sm:$0xff]
        %v492 = vld [vmem:[#allocation2 + $0x38] sm:$0xff]
        %v493 = vld [vmem:[#allocation2 + $0x40] sm:$0xff]
        %v494 = vld [vmem:[#allocation2 + $0x48] sm:$0xff]
        %v495 = vld [vmem:[#allocation2 + $0x50] sm:$0xff]
        %v496 = vld [vmem:[#allocation2 + $0x58] sm:$0xff]
        %v497 = vld [vmem:[#allocation2 + $0x60] sm:$0xff]
        %v498 = vld [vmem:[#allocation2 + $0x68] sm:$0xff]
        %v499 = vld [vmem:[#allocation2 + $0x70] sm:$0xff]
        %v500 = vld [vmem:[#allocation2 + $0x78] sm:$0xff]
        %v501 = vld [vmem:[%s297] sm:$0xff]
        %v502 = vld [vmem:[%s297 + $0x8] sm:$0xff]
        %v503 = vld [vmem:[%s297 + $0x10] sm:$0xff]
        %v504 = vld [vmem:[%s297 + $0x18] sm:$0xff]
        %v505 = vld [vmem:[%s297 + $0x20] sm:$0xff]
        %v506 = vld [vmem:[%s297 + $0x28] sm:$0xff]
        %v507 = vld [vmem:[%s297 + $0x30] sm:$0xff]
        %v508 = vld [vmem:[%s297 + $0x38] sm:$0xff]
        %v509 = vld [vmem:[%s297 + $0x40] sm:$0xff]
        %v510 = vld [vmem:[%s297 + $0x48] sm:$0xff]
        %v511 = vld [vmem:[%s297 + $0x50] sm:$0xff]
        %v512 = vld [vmem:[%s297 + $0x58] sm:$0xff]
        %v513 = vld [vmem:[%s297 + $0x60] sm:$0xff]
        %v514 = vld [vmem:[%s297 + $0x68] sm:$0xff]
        %v515 = vld [vmem:[%s297 + $0x70] sm:$0xff]
        %v516 = vld [vmem:[%s297 + $0x78] sm:$0xff]
        %517 = vmatpush.msra.mxu0 %v516
        %518 = vmatpush.msra.mxu0 %v515
        %519 = vmatpush.msra.mxu0 %v514
        %520 = vmatpush.msra.mxu0 %v513
        %521 = vmatpush.msra.mxu0 %v512
        %522 = vmatpush.msra.mxu0 %v511
        %523 = vmatpush.msra.mxu0 %v510
        %524 = vmatpush.msra.mxu0 %v509
        %525 = vmatpush.msra.mxu0 %v508
        %526 = vmatpush.msra.mxu0 %v507
        %527 = vmatpush.msra.mxu0 %v506
        %528 = vmatpush.msra.mxu0 %v505
        %529 = vmatpush.msra.mxu0 %v504
        %530 = vmatpush.msra.mxu0 %v503
        %531 = vmatpush.msra.mxu0 %v502
        %532 = vmatpush.msra.mxu0 %v501
        %533 = vmatmul.f32.gmra.mxu0 %v469
        %v534 = vpop.f32.mrf.mxu0
        %v535 = vadd.f32 0.0, %v534
        %536 = vmatmul.f32.gmra.mxu0 %v470
        %v537 = vpop.f32.mrf.mxu0
        %v538 = vadd.f32 0.0, %v537
        %539 = vmatmul.f32.gmra.mxu0 %v471
        %v540 = vpop.f32.mrf.mxu0
        %v541 = vadd.f32 0.0, %v540
        %542 = vmatmul.f32.gmra.mxu0 %v472
        %v543 = vpop.f32.mrf.mxu0
        %v544 = vadd.f32 0.0, %v543
        %545 = vmatmul.f32.gmra.mxu0 %v473
        %v546 = vpop.f32.mrf.mxu0
        %v547 = vadd.f32 0.0, %v546
        %548 = vmatmul.f32.gmra.mxu0 %v474
        %v549 = vpop.f32.mrf.mxu0
        %v550 = vadd.f32 0.0, %v549
        %551 = vmatmul.f32.gmra.mxu0 %v475
        %v552 = vpop.f32.mrf.mxu0
        %v553 = vadd.f32 0.0, %v552
        %554 = vmatmul.f32.gmra.mxu0 %v476
        %v555 = vpop.f32.mrf.mxu0
        %v556 = vadd.f32 0.0, %v555
        %557 = vmatmul.f32.gmra.mxu0 %v477
        %v558 = vpop.f32.mrf.mxu0
        %v559 = vadd.f32 0.0, %v558
        %560 = vmatmul.f32.gmra.mxu0 %v478
        %v561 = vpop.f32.mrf.mxu0
        %v562 = vadd.f32 0.0, %v561
        %563 = vmatmul.f32.gmra.mxu0 %v479
        %v564 = vpop.f32.mrf.mxu0
        %v565 = vadd.f32 0.0, %v564
        %566 = vmatmul.f32.gmra.mxu0 %v480
        %v567 = vpop.f32.mrf.mxu0
        %v568 = vadd.f32 0.0, %v567
        %569 = vmatmul.f32.gmra.mxu0 %v481
        %v570 = vpop.f32.mrf.mxu0
        %v571 = vadd.f32 0.0, %v570
        %572 = vmatmul.f32.gmra.mxu0 %v482
        %v573 = vpop.f32.mrf.mxu0
        %v574 = vadd.f32 0.0, %v573
        %575 = vmatmul.f32.gmra.mxu0 %v483
        %v576 = vpop.f32.mrf.mxu0
        %v577 = vadd.f32 0.0, %v576
        %578 = vmatmul.f32.gmra.mxu0 %v484
        %v579 = vpop.f32.mrf.mxu0
        %v580 = vadd.f32 0.0, %v579
        %581 = vdwg.mxu0
        %v582 = vadd.f32 %v485, %v535
        %v583 = vadd.f32 %v486, %v538
        %v584 = vadd.f32 %v487, %v541
        %v585 = vadd.f32 %v488, %v544
        %v586 = vadd.f32 %v489, %v547
        %v587 = vadd.f32 %v490, %v550
        %v588 = vadd.f32 %v491, %v553
        %v589 = vadd.f32 %v492, %v556
        %v590 = vadd.f32 %v493, %v559
        %v591 = vadd.f32 %v494, %v562
        %v592 = vadd.f32 %v495, %v565
        %v593 = vadd.f32 %v496, %v568
        %v594 = vadd.f32 %v497, %v571
        %v595 = vadd.f32 %v498, %v574
        %v596 = vadd.f32 %v499, %v577
        %v597 = vadd.f32 %v500, %v580
        %598 = vst [vmem:[#allocation2] sm:$0xff] %v582
        %599 = vst [vmem:[#allocation2 + $0x8] sm:$0xff] %v583
        %600 = vst [vmem:[#allocation2 + $0x10] sm:$0xff] %v584
        %601 = vst [vmem:[#allocation2 + $0x18] sm:$0xff] %v585
        %602 = vst [vmem:[#allocation2 + $0x20] sm:$0xff] %v586
        %603 = vst [vmem:[#allocation2 + $0x28] sm:$0xff] %v587
        %604 = vst [vmem:[#allocation2 + $0x30] sm:$0xff] %v588
        %605 = vst [vmem:[#allocation2 + $0x38] sm:$0xff] %v589
        %606 = vst [vmem:[#allocation2 + $0x40] sm:$0xff] %v590
        %607 = vst [vmem:[#allocation2 + $0x48] sm:$0xff] %v591
        %608 = vst [vmem:[#allocation2 + $0x50] sm:$0xff] %v592
        %609 = vst [vmem:[#allocation2 + $0x58] sm:$0xff] %v593
        %610 = vst [vmem:[#allocation2 + $0x60] sm:$0xff] %v594
        %611 = vst [vmem:[#allocation2 + $0x68] sm:$0xff] %v595
        %612 = vst [vmem:[#allocation2 + $0x70] sm:$0xff] %v596
        %613 = vst [vmem:[#allocation2 + $0x78] sm:$0xff] %v597
        %p614 = scmp.eq.s32.totalorder %s24, 2
        // Predicated region
        $region45: #{tpu_custom_call.1} parent=39 // pred_check
          %p615 = pneg %p614
        $region46: #{tpu_custom_call.1} parent=39 // pred_check_branch
          %617 = sbr.rel (%p615) target = $region48
        $region47: #{tpu_custom_call.1} parent=39 // pred_region
          %v618 = vld [vmem:[#allocation2] sm:$0xff]
          %v619 = vld [vmem:[#allocation2 + $0x8] sm:$0xff]
          %v620 = vld [vmem:[#allocation2 + $0x10] sm:$0xff]
          %v621 = vld [vmem:[#allocation2 + $0x18] sm:$0xff]
          %v622 = vld [vmem:[#allocation2 + $0x20] sm:$0xff]
          %v623 = vld [vmem:[#allocation2 + $0x28] sm:$0xff]
          %v624 = vld [vmem:[#allocation2 + $0x30] sm:$0xff]
          %v625 = vld [vmem:[#allocation2 + $0x38] sm:$0xff]
          %v626 = vld [vmem:[#allocation2 + $0x40] sm:$0xff]
          %v627 = vld [vmem:[#allocation2 + $0x48] sm:$0xff]
          %v628 = vld [vmem:[#allocation2 + $0x50] sm:$0xff]
          %v629 = vld [vmem:[#allocation2 + $0x58] sm:$0xff]
          %v630 = vld [vmem:[#allocation2 + $0x60] sm:$0xff]
          %v631 = vld [vmem:[#allocation2 + $0x68] sm:$0xff]
          %v632 = vld [vmem:[#allocation2 + $0x70] sm:$0xff]
          %v633 = vld [vmem:[#allocation2 + $0x78] sm:$0xff]
          %650 = vrot.lane.b32.xlu0 %v618, 127
          %v651 = vpop.permute.xlu0 %650
          %652 = vrot.lane.b32.xlu0 %v619, 127
          %v653 = vpop.permute.xlu0 %652
          %654 = vrot.lane.b32.xlu0 %v620, 127
          %v655 = vpop.permute.xlu0 %654
          %656 = vrot.lane.b32.xlu0 %v621, 127
          %v657 = vpop.permute.xlu0 %656
          %658 = vrot.lane.b32.xlu0 %v622, 127
          %v659 = vpop.permute.xlu0 %658
          %660 = vrot.lane.b32.xlu0 %v623, 127
          %v661 = vpop.permute.xlu0 %660
          %662 = vrot.lane.b32.xlu0 %v624, 127
          %v663 = vpop.permute.xlu0 %662
          %664 = vrot.lane.b32.xlu0 %v625, 127
          %v665 = vpop.permute.xlu0 %664
          %666 = vrot.lane.b32.xlu0 %v626, 127
          %v667 = vpop.permute.xlu0 %666
          %668 = vrot.lane.b32.xlu0 %v627, 127
          %v669 = vpop.permute.xlu0 %668
          %670 = vrot.lane.b32.xlu0 %v628, 127
          %v671 = vpop.permute.xlu0 %670
          %672 = vrot.lane.b32.xlu0 %v629, 127
          %v673 = vpop.permute.xlu0 %672
          %674 = vrot.lane.b32.xlu0 %v630, 127
          %v675 = vpop.permute.xlu0 %674
          %676 = vrot.lane.b32.xlu0 %v631, 127
          %v677 = vpop.permute.xlu0 %676
          %678 = vrot.lane.b32.xlu0 %v632, 127
          %v679 = vpop.permute.xlu0 %678
          %680 = vrot.lane.b32.xlu0 %v633, 127
          %v681 = vpop.permute.xlu0 %680
          %v698 = vrcp.pop %v651
          %v699 = vmul.f32 %v651, %v698
          %v700 = vsub.f32 1.0, %v699
          %v701 = vmul.f32 %v698, %v700
          %v702 = vadd.f32 %v698, %v701
          %vm703 = vweird.f32 %v651
          %vm704 = vweird.f32 %v698
          %vm705 = vmor %vm703, %vm704
          %v706 = vsel %vm705, %v698, %v702
          %v707 = vand.u32 2147483647, %v651
          %vm708 = vcmp.eq.f32.partialorder %v707, 8.507059e+37
          %v709 = vand.u32 %v651, 2147483648
          %v710 = vor.u32 1.1754944e-38, %v709
          %v711 = vsel %vm708, %v710, %v706
          %v712 = vmul.f32 %v618, %v711
          %v713 = vrcp.pop %v653
          %v714 = vmul.f32 %v653, %v713
          %v715 = vsub.f32 1.0, %v714
          %v716 = vmul.f32 %v713, %v715
          %v717 = vadd.f32 %v713, %v716
          %vm718 = vweird.f32 %v653
          %vm719 = vweird.f32 %v713
          %vm720 = vmor %vm718, %vm719
          %v721 = vsel %vm720, %v713, %v717
          %v722 = vand.u32 2147483647, %v653
          %vm723 = vcmp.eq.f32.partialorder %v722, 8.507059e+37
          %v724 = vand.u32 %v653, 2147483648
          %v725 = vor.u32 1.1754944e-38, %v724
          %v726 = vsel %vm723, %v725, %v721
          %v727 = vmul.f32 %v619, %v726
          %v728 = vrcp.pop %v655
          %v729 = vmul.f32 %v655, %v728
          %v730 = vsub.f32 1.0, %v729
          %v731 = vmul.f32 %v728, %v730
          %v732 = vadd.f32 %v728, %v731
          %vm733 = vweird.f32 %v655
          %vm734 = vweird.f32 %v728
          %vm735 = vmor %vm733, %vm734
          %v736 = vsel %vm735, %v728, %v732
          %v737 = vand.u32 2147483647, %v655
          %vm738 = vcmp.eq.f32.partialorder %v737, 8.507059e+37
          %v739 = vand.u32 %v655, 2147483648
          %v740 = vor.u32 1.1754944e-38, %v739
          %v741 = vsel %vm738, %v740, %v736
          %v742 = vmul.f32 %v620, %v741
          %v743 = vrcp.pop %v657
          %v744 = vmul.f32 %v657, %v743
          %v745 = vsub.f32 1.0, %v744
          %v746 = vmul.f32 %v743, %v745
          %v747 = vadd.f32 %v743, %v746
          %vm748 = vweird.f32 %v657
          %vm749 = vweird.f32 %v743
          %vm750 = vmor %vm748, %vm749
          %v751 = vsel %vm750, %v743, %v747
          %v752 = vand.u32 2147483647, %v657
          %vm753 = vcmp.eq.f32.partialorder %v752, 8.507059e+37
          %v754 = vand.u32 %v657, 2147483648
          %v755 = vor.u32 1.1754944e-38, %v754
          %v756 = vsel %vm753, %v755, %v751
          %v757 = vmul.f32 %v621, %v756
          %v758 = vrcp.pop %v659
          %v759 = vmul.f32 %v659, %v758
          %v760 = vsub.f32 1.0, %v759
          %v761 = vmul.f32 %v758, %v760
          %v762 = vadd.f32 %v758, %v761
          %vm763 = vweird.f32 %v659
          %vm764 = vweird.f32 %v758
          %vm765 = vmor %vm763, %vm764
          %v766 = vsel %vm765, %v758, %v762
          %v767 = vand.u32 2147483647, %v659
          %vm768 = vcmp.eq.f32.partialorder %v767, 8.507059e+37
          %v769 = vand.u32 %v659, 2147483648
          %v770 = vor.u32 1.1754944e-38, %v769
          %v771 = vsel %vm768, %v770, %v766
          %v772 = vmul.f32 %v622, %v771
          %v773 = vrcp.pop %v661
          %v774 = vmul.f32 %v661, %v773
          %v775 = vsub.f32 1.0, %v774
          %v776 = vmul.f32 %v773, %v775
          %v777 = vadd.f32 %v773, %v776
          %vm778 = vweird.f32 %v661
          %vm779 = vweird.f32 %v773
          %vm780 = vmor %vm778, %vm779
          %v781 = vsel %vm780, %v773, %v777
          %v782 = vand.u32 2147483647, %v661
          %vm783 = vcmp.eq.f32.partialorder %v782, 8.507059e+37
          %v784 = vand.u32 %v661, 2147483648
          %v785 = vor.u32 1.1754944e-38, %v784
          %v786 = vsel %vm783, %v785, %v781
          %v787 = vmul.f32 %v623, %v786
          %v788 = vrcp.pop %v663
          %v789 = vmul.f32 %v663, %v788
          %v790 = vsub.f32 1.0, %v789
          %v791 = vmul.f32 %v788, %v790
          %v792 = vadd.f32 %v788, %v791
          %vm793 = vweird.f32 %v663
          %vm794 = vweird.f32 %v788
          %vm795 = vmor %vm793, %vm794
          %v796 = vsel %vm795, %v788, %v792
          %v797 = vand.u32 2147483647, %v663
          %vm798 = vcmp.eq.f32.partialorder %v797, 8.507059e+37
          %v799 = vand.u32 %v663, 2147483648
          %v800 = vor.u32 1.1754944e-38, %v799
          %v801 = vsel %vm798, %v800, %v796
          %v802 = vmul.f32 %v624, %v801
          %v803 = vrcp.pop %v665
          %v804 = vmul.f32 %v665, %v803
          %v805 = vsub.f32 1.0, %v804
          %v806 = vmul.f32 %v803, %v805
          %v807 = vadd.f32 %v803, %v806
          %vm808 = vweird.f32 %v665
          %vm809 = vweird.f32 %v803
          %vm810 = vmor %vm808, %vm809
          %v811 = vsel %vm810, %v803, %v807
          %v812 = vand.u32 2147483647, %v665
          %vm813 = vcmp.eq.f32.partialorder %v812, 8.507059e+37
          %v814 = vand.u32 %v665, 2147483648
          %v815 = vor.u32 1.1754944e-38, %v814
          %v816 = vsel %vm813, %v815, %v811
          %v817 = vmul.f32 %v625, %v816
          %v818 = vrcp.pop %v667
          %v819 = vmul.f32 %v667, %v818
          %v820 = vsub.f32 1.0, %v819
          %v821 = vmul.f32 %v818, %v820
          %v822 = vadd.f32 %v818, %v821
          %vm823 = vweird.f32 %v667
          %vm824 = vweird.f32 %v818
          %vm825 = vmor %vm823, %vm824
          %v826 = vsel %vm825, %v818, %v822
          %v827 = vand.u32 2147483647, %v667
          %vm828 = vcmp.eq.f32.partialorder %v827, 8.507059e+37
          %v829 = vand.u32 %v667, 2147483648
          %v830 = vor.u32 1.1754944e-38, %v829
          %v831 = vsel %vm828, %v830, %v826
          %v832 = vmul.f32 %v626, %v831
          %v833 = vrcp.pop %v669
          %v834 = vmul.f32 %v669, %v833
          %v835 = vsub.f32 1.0, %v834
          %v836 = vmul.f32 %v833, %v835
          %v837 = vadd.f32 %v833, %v836
          %vm838 = vweird.f32 %v669
          %vm839 = vweird.f32 %v833
          %vm840 = vmor %vm838, %vm839
          %v841 = vsel %vm840, %v833, %v837
          %v842 = vand.u32 2147483647, %v669
          %vm843 = vcmp.eq.f32.partialorder %v842, 8.507059e+37
          %v844 = vand.u32 %v669, 2147483648
          %v845 = vor.u32 1.1754944e-38, %v844
          %v846 = vsel %vm843, %v845, %v841
          %v847 = vmul.f32 %v627, %v846
          %v848 = vrcp.pop %v671
          %v849 = vmul.f32 %v671, %v848
          %v850 = vsub.f32 1.0, %v849
          %v851 = vmul.f32 %v848, %v850
          %v852 = vadd.f32 %v848, %v851
          %vm853 = vweird.f32 %v671
          %vm854 = vweird.f32 %v848
          %vm855 = vmor %vm853, %vm854
          %v856 = vsel %vm855, %v848, %v852
          %v857 = vand.u32 2147483647, %v671
          %vm858 = vcmp.eq.f32.partialorder %v857, 8.507059e+37
          %v859 = vand.u32 %v671, 2147483648
          %v860 = vor.u32 1.1754944e-38, %v859
          %v861 = vsel %vm858, %v860, %v856
          %v862 = vmul.f32 %v628, %v861
          %v863 = vrcp.pop %v673
          %v864 = vmul.f32 %v673, %v863
          %v865 = vsub.f32 1.0, %v864
          %v866 = vmul.f32 %v863, %v865
          %v867 = vadd.f32 %v863, %v866
          %vm868 = vweird.f32 %v673
          %vm869 = vweird.f32 %v863
          %vm870 = vmor %vm868, %vm869
          %v871 = vsel %vm870, %v863, %v867
          %v872 = vand.u32 2147483647, %v673
          %vm873 = vcmp.eq.f32.partialorder %v872, 8.507059e+37
          %v874 = vand.u32 %v673, 2147483648
          %v875 = vor.u32 1.1754944e-38, %v874
          %v876 = vsel %vm873, %v875, %v871
          %v877 = vmul.f32 %v629, %v876
          %v878 = vrcp.pop %v675
          %v879 = vmul.f32 %v675, %v878
          %v880 = vsub.f32 1.0, %v879
          %v881 = vmul.f32 %v878, %v880
          %v882 = vadd.f32 %v878, %v881
          %vm883 = vweird.f32 %v675
          %vm884 = vweird.f32 %v878
          %vm885 = vmor %vm883, %vm884
          %v886 = vsel %vm885, %v878, %v882
          %v887 = vand.u32 2147483647, %v675
          %vm888 = vcmp.eq.f32.partialorder %v887, 8.507059e+37
          %v889 = vand.u32 %v675, 2147483648
          %v890 = vor.u32 1.1754944e-38, %v889
          %v891 = vsel %vm888, %v890, %v886
          %v892 = vmul.f32 %v630, %v891
          %v893 = vrcp.pop %v677
          %v894 = vmul.f32 %v677, %v893
          %v895 = vsub.f32 1.0, %v894
          %v896 = vmul.f32 %v893, %v895
          %v897 = vadd.f32 %v893, %v896
          %vm898 = vweird.f32 %v677
          %vm899 = vweird.f32 %v893
          %vm900 = vmor %vm898, %vm899
          %v901 = vsel %vm900, %v893, %v897
          %v902 = vand.u32 2147483647, %v677
          %vm903 = vcmp.eq.f32.partialorder %v902, 8.507059e+37
          %v904 = vand.u32 %v677, 2147483648
          %v905 = vor.u32 1.1754944e-38, %v904
          %v906 = vsel %vm903, %v905, %v901
          %v907 = vmul.f32 %v631, %v906
          %v908 = vrcp.pop %v679
          %v909 = vmul.f32 %v679, %v908
          %v910 = vsub.f32 1.0, %v909
          %v911 = vmul.f32 %v908, %v910
          %v912 = vadd.f32 %v908, %v911
          %vm913 = vweird.f32 %v679
          %vm914 = vweird.f32 %v908
          %vm915 = vmor %vm913, %vm914
          %v916 = vsel %vm915, %v908, %v912
          %v917 = vand.u32 2147483647, %v679
          %vm918 = vcmp.eq.f32.partialorder %v917, 8.507059e+37
          %v919 = vand.u32 %v679, 2147483648
          %v920 = vor.u32 1.1754944e-38, %v919
          %v921 = vsel %vm918, %v920, %v916
          %v922 = vmul.f32 %v632, %v921
          %v923 = vrcp.pop %v681
          %v924 = vmul.f32 %v681, %v923
          %v925 = vsub.f32 1.0, %v924
          %v926 = vmul.f32 %v923, %v925
          %v927 = vadd.f32 %v923, %v926
          %vm928 = vweird.f32 %v681
          %vm929 = vweird.f32 %v923
          %vm930 = vmor %vm928, %vm929
          %v931 = vsel %vm930, %v923, %v927
          %v932 = vand.u32 2147483647, %v681
          %vm933 = vcmp.eq.f32.partialorder %v932, 8.507059e+37
          %v934 = vand.u32 %v681, 2147483648
          %v935 = vor.u32 1.1754944e-38, %v934
          %v936 = vsel %vm933, %v935, %v931
          %v937 = vmul.f32 %v633, %v936
          %v938 = vadd.f32 %v712, 1e-45
          %v939 = vadd.f32 %v727, 1e-45
          %v940 = vadd.f32 %v742, 1e-45
          %v941 = vadd.f32 %v757, 1e-45
          %v942 = vadd.f32 %v772, 1e-45
          %v943 = vadd.f32 %v787, 1e-45
          %v944 = vadd.f32 %v802, 1e-45
          %v945 = vadd.f32 %v817, 1e-45
          %v946 = vadd.f32 %v832, 1e-45
          %v947 = vadd.f32 %v847, 1e-45
          %v948 = vadd.f32 %v862, 1e-45
          %v949 = vadd.f32 %v877, 1e-45
          %v950 = vadd.f32 %v892, 1e-45
          %v951 = vadd.f32 %v907, 1e-45
          %v952 = vadd.f32 %v922, 1e-45
          %v953 = vadd.f32 %v937, 1e-45
          %v954 = vlog2.pop %v938
          %v955 = vmul.f32 %v954, 0.6931472
          %v956 = vlog2.pop %v939
          %v957 = vmul.f32 %v956, 0.6931472
          %v958 = vlog2.pop %v940
          %v959 = vmul.f32 %v958, 0.6931472
          %v960 = vlog2.pop %v941
          %v961 = vmul.f32 %v960, 0.6931472
          %v962 = vlog2.pop %v942
          %v963 = vmul.f32 %v962, 0.6931472
          %v964 = vlog2.pop %v943
          %v965 = vmul.f32 %v964, 0.6931472
          %v966 = vlog2.pop %v944
          %v967 = vmul.f32 %v966, 0.6931472
          %v968 = vlog2.pop %v945
          %v969 = vmul.f32 %v968, 0.6931472
          %v970 = vlog2.pop %v946
          %v971 = vmul.f32 %v970, 0.6931472
          %v972 = vlog2.pop %v947
          %v973 = vmul.f32 %v972, 0.6931472
          %v974 = vlog2.pop %v948
          %v975 = vmul.f32 %v974, 0.6931472
          %v976 = vlog2.pop %v949
          %v977 = vmul.f32 %v976, 0.6931472
          %v978 = vlog2.pop %v950
          %v979 = vmul.f32 %v978, 0.6931472
          %v980 = vlog2.pop %v951
          %v981 = vmul.f32 %v980, 0.6931472
          %v982 = vlog2.pop %v952
          %v983 = vmul.f32 %v982, 0.6931472
          %v984 = vlog2.pop %v953
          %v985 = vmul.f32 %v984, 0.6931472
          %v986 = vld [vmem:[%s315] sm:$0xff]
          %v987 = vld [vmem:[%s315 + $0x8] sm:$0xff]
          %v988 = vld [vmem:[%s315 + $0x10] sm:$0xff]
          %v989 = vld [vmem:[%s315 + $0x18] sm:$0xff]
          %v990 = vld [vmem:[%s315 + $0x20] sm:$0xff]
          %v991 = vld [vmem:[%s315 + $0x28] sm:$0xff]
          %v992 = vld [vmem:[%s315 + $0x30] sm:$0xff]
          %v993 = vld [vmem:[%s315 + $0x38] sm:$0xff]
          %v994 = vld [vmem:[%s315 + $0x40] sm:$0xff]
          %v995 = vld [vmem:[%s315 + $0x48] sm:$0xff]
          %v996 = vld [vmem:[%s315 + $0x50] sm:$0xff]
          %v997 = vld [vmem:[%s315 + $0x58] sm:$0xff]
          %v998 = vld [vmem:[%s315 + $0x60] sm:$0xff]
          %v999 = vld [vmem:[%s315 + $0x68] sm:$0xff]
          %v1000 = vld [vmem:[%s315 + $0x70] sm:$0xff]
          %v1001 = vld [vmem:[%s315 + $0x78] sm:$0xff]
          %v1002 = vld [vmem:[%s309] sm:$0xff]
          %v1003 = vld [vmem:[%s309 + $0x8] sm:$0xff]
          %v1004 = vld [vmem:[%s309 + $0x10] sm:$0xff]
          %v1005 = vld [vmem:[%s309 + $0x18] sm:$0xff]
          %v1006 = vld [vmem:[%s309 + $0x20] sm:$0xff]
          %v1007 = vld [vmem:[%s309 + $0x28] sm:$0xff]
          %v1008 = vld [vmem:[%s309 + $0x30] sm:$0xff]
          %v1009 = vld [vmem:[%s309 + $0x38] sm:$0xff]
          %v1010 = vld [vmem:[%s309 + $0x40] sm:$0xff]
          %v1011 = vld [vmem:[%s309 + $0x48] sm:$0xff]
          %v1012 = vld [vmem:[%s309 + $0x50] sm:$0xff]
          %v1013 = vld [vmem:[%s309 + $0x58] sm:$0xff]
          %v1014 = vld [vmem:[%s309 + $0x60] sm:$0xff]
          %v1015 = vld [vmem:[%s309 + $0x68] sm:$0xff]
          %v1016 = vld [vmem:[%s309 + $0x70] sm:$0xff]
          %v1017 = vld [vmem:[%s309 + $0x78] sm:$0xff]
          %v1018 = vsub.f32 %v1002, %v955
          %v1019 = vsub.f32 %v1003, %v957
          %v1020 = vsub.f32 %v1004, %v959
          %v1021 = vsub.f32 %v1005, %v961
          %v1022 = vsub.f32 %v1006, %v963
          %v1023 = vsub.f32 %v1007, %v965
          %v1024 = vsub.f32 %v1008, %v967
          %v1025 = vsub.f32 %v1009, %v969
          %v1026 = vsub.f32 %v1010, %v971
          %v1027 = vsub.f32 %v1011, %v973
          %v1028 = vsub.f32 %v1012, %v975
          %v1029 = vsub.f32 %v1013, %v977
          %v1030 = vsub.f32 %v1014, %v979
          %v1031 = vsub.f32 %v1015, %v981
          %v1032 = vsub.f32 %v1016, %v983
          %v1033 = vsub.f32 %v1017, %v985
          %v1034 = vmul.f32 %v1018, %v986
          %v1035 = vmul.f32 %v1019, %v987
          %v1036 = vmul.f32 %v1020, %v988
          %v1037 = vmul.f32 %v1021, %v989
          %v1038 = vmul.f32 %v1022, %v990
          %v1039 = vmul.f32 %v1023, %v991
          %v1040 = vmul.f32 %v1024, %v992
          %v1041 = vmul.f32 %v1025, %v993
          %v1042 = vmul.f32 %v1026, %v994
          %v1043 = vmul.f32 %v1027, %v995
          %v1044 = vmul.f32 %v1028, %v996
          %v1045 = vmul.f32 %v1029, %v997
          %v1046 = vmul.f32 %v1030, %v998
          %v1047 = vmul.f32 %v1031, %v999
          %v1048 = vmul.f32 %v1032, %v1000
          %v1049 = vmul.f32 %v1033, %v1001
          %vm1050 = vcmask 7168
          %v1051 = vsel %vm1050, %v1034, 0.0
          %v1052 = vsel %vm1050, %v1035, 0.0
          %v1053 = vadd.f32 %v1051, %v1052
          %v1054 = vsel %vm1050, %v1036, 0.0
          %v1055 = vadd.f32 %v1053, %v1054
          %v1056 = vsel %vm1050, %v1037, 0.0
          %v1057 = vadd.f32 %v1055, %v1056
          %v1058 = vsel %vm1050, %v1038, 0.0
          %v1059 = vadd.f32 %v1057, %v1058
          %v1060 = vsel %vm1050, %v1039, 0.0
          %v1061 = vadd.f32 %v1059, %v1060
          %v1062 = vsel %vm1050, %v1040, 0.0
          %v1063 = vadd.f32 %v1061, %v1062
          %v1064 = vsel %vm1050, %v1041, 0.0
          %v1065 = vadd.f32 %v1063, %v1064
          %v1066 = vsel %vm1050, %v1042, 0.0
          %v1067 = vadd.f32 %v1065, %v1066
          %v1068 = vsel %vm1050, %v1043, 0.0
          %v1069 = vadd.f32 %v1067, %v1068
          %v1070 = vsel %vm1050, %v1044, 0.0
          %v1071 = vadd.f32 %v1069, %v1070
          %v1072 = vsel %vm1050, %v1045, 0.0
          %v1073 = vadd.f32 %v1071, %v1072
          %v1074 = vsel %vm1050, %v1046, 0.0
          %v1075 = vadd.f32 %v1073, %v1074
          %v1076 = vsel %vm1050, %v1047, 0.0
          %v1077 = vadd.f32 %v1075, %v1076
          %v1078 = vsel %vm1050, %v1048, 0.0
          %v1079 = vadd.f32 %v1077, %v1078
          %v1080 = vsel %vm1050, %v1049, 0.0
          %v1081 = vadd.f32 %v1079, %v1080
          %1082 = vadd.xlane.f32.xlu0 %v1081
          %v1083 = vpop.xlane.xlu0 %1082
          %v1084 = vrot.slane %v1083, 4
          %v1085 = vadd.f32 %v1083, %v1084
          %v1086 = vrot.slane %v1085, 2
          %v1087 = vadd.f32 %v1085, %v1086
          %v1088 = vrot.slane %v1087, 1
          %v1089 = vadd.f32 %v1087, %v1088
          %s1090 = vtos %v1089
          %v1091 = vsel %vm1050, %v986, 0.0
          %v1092 = vsel %vm1050, %v987, 0.0
          %v1093 = vadd.f32 %v1091, %v1092
          %v1094 = vsel %vm1050, %v988, 0.0
          %v1095 = vadd.f32 %v1093, %v1094
          %v1096 = vsel %vm1050, %v989, 0.0
          %v1097 = vadd.f32 %v1095, %v1096
          %v1098 = vsel %vm1050, %v990, 0.0
          %v1099 = vadd.f32 %v1097, %v1098
          %v1100 = vsel %vm1050, %v991, 0.0
          %v1101 = vadd.f32 %v1099, %v1100
          %v1102 = vsel %vm1050, %v992, 0.0
          %v1103 = vadd.f32 %v1101, %v1102
          %v1104 = vsel %vm1050, %v993, 0.0
          %v1105 = vadd.f32 %v1103, %v1104
          %v1106 = vsel %vm1050, %v994, 0.0
          %v1107 = vadd.f32 %v1105, %v1106
          %v1108 = vsel %vm1050, %v995, 0.0
          %v1109 = vadd.f32 %v1107, %v1108
          %v1110 = vsel %vm1050, %v996, 0.0
          %v1111 = vadd.f32 %v1109, %v1110
          %v1112 = vsel %vm1050, %v997, 0.0
          %v1113 = vadd.f32 %v1111, %v1112
          %v1114 = vsel %vm1050, %v998, 0.0
          %v1115 = vadd.f32 %v1113, %v1114
          %v1116 = vsel %vm1050, %v999, 0.0
          %v1117 = vadd.f32 %v1115, %v1116
          %v1118 = vsel %vm1050, %v1000, 0.0
          %v1119 = vadd.f32 %v1117, %v1118
          %v1120 = vsel %vm1050, %v1001, 0.0
          %v1121 = vadd.f32 %v1119, %v1120
          %1122 = vadd.xlane.f32.xlu0 %v1121
          %v1123 = vpop.xlane.xlu0 %1122
          %v1124 = vrot.slane %v1123, 4
          %v1125 = vadd.f32 %v1123, %v1124
          %v1126 = vrot.slane %v1125, 2
          %v1127 = vadd.f32 %v1125, %v1126
          %v1128 = vrot.slane %v1127, 1
          %v1129 = vadd.f32 %v1127, %v1128
          %s1130 = vtos %v1129
          %v1131 = vlaneseq
          %v1132 = vshrl.u32 %v1131, 7
          %v1133 = vlaneseq
          %v1134 = vand.u32 %v1133, 127
          %vm1135 = vcmp.eq.s32.totalorder %v1132, 0
          %vm1136 = vcmp.eq.s32.totalorder %v1134, 0
          %vm1137 = vmand %vm1135, %vm1136
          %vm1138 = vcmp.eq.s32.totalorder %v1134, 1
          %vm1139 = vmand %vm1135, %vm1138
          %v1140 = vstv %s1130
          %v1141 = vsel %vm1139, %v1140, 0.0
          %v1142 = vstv %s1090
          %v1143 = vsel %vm1137, %v1142, %v1141
          %1144 = vst [vmem:[%s289] sm:$0xff] %v1143
        $region48: #{tpu_custom_call.1} parent=39 // pred_fallthru
          _
        %s1145 = sand.u32 %s169, 1
        %s1146 = scalar_lea.sflag [#allocation4], %s1145
        %s1147 = sand.u32 %s169, 1
        %s1148 = smul.addr %s1147, 8
        %s1149 = scalar_lea.vmem [#allocation3], %s1148
        // Predicated region
        $region49: #{tpu_custom_call.1} parent=39 // pred_check
          %p1150 = pneg %p179
        $region50: #{tpu_custom_call.1} parent=39 // pred_check_branch
          %1152 = sbr.rel (%p1150) target = $region52
        $region51: #{tpu_custom_call.1} parent=39 // pred_region
          %1154 = vsyncadd %s1146, 0
          %s1155 = smul.addr %s23, 8
          %s1156 = scalar_lea.hbm %s5, %s1155
          %s1158 = sshll.u32 %s1149, 4
          %s1159 = int_to_ptr.vmem [resolvable:$true] %s1158
          %s1160 = sshll.u32 %s1156, 4
          %s1161 = int_to_ptr.hbm [resolvable:$true] %s1160
          %1163 = dma.vmem_to_hbm [thread:$0]  %s1159, 128, %s1161, %s1146
        $region52: #{tpu_custom_call.1} parent=39 // pred_fallthru
          _
      $region40: #{tpu_custom_call.1} parent=5 // pred_fallthru
        _
      %p1164 = scmp.le.s32.totalorder 2, %s14
      // Predicated region
      $region53: #{tpu_custom_call.1} parent=5 // pred_check
        %p1165 = pneg %p1164
      $region54: #{tpu_custom_call.1} parent=5 // pred_check_branch
        %1167 = sbr.rel (%p1165) target = $region56
      $region55: #{tpu_custom_call.1} parent=5 // pred_region
        %s1168 = ssub.s32 %s14, 2
        // Predicated region
        $region57: #{tpu_custom_call.1} parent=55 // pred_check
          %p1169 = pneg %p185
        $region58: #{tpu_custom_call.1} parent=55 // pred_check_branch
          %1171 = sbr.rel (%p1169) target = $region60
        $region59: #{tpu_custom_call.1} parent=55 // pred_region
          %s1172 = sand.u32 %s170, 1
          %s1173 = scalar_lea.sflag [#allocation4], %s1172
          %s1174 = sand.u32 %s170, 1
          %s1175 = smul.addr %s1174, 8
          %s1176 = scalar_lea.vmem [#allocation3], %s1175
          %1178 = dma.done %s1173, 128
        $region60: #{tpu_custom_call.1} parent=55 // pred_fallthru
          _
      $region56: #{tpu_custom_call.1} parent=5 // pred_fallthru
        _
    $region6: #{tpu_custom_call.1} parent=1 // loop_footer
      %s18 = sadd.s32 1, %s14
    $region7: #{tpu_custom_call.1} parent=1 // loop_footer_branch
      %13 = sbr.rel target = $region3
    $region8: #{tpu_custom_call.1} parent=1 // loop_exit
      _
    %1179 = vsyncpa [#allocation4], 1
    %s1180 = scalar_lea.sflag [#allocation4], 1
    %1181 = vsyncpa %s1180, 1

</llo_original>
